<compile_context>
chip_gen: v6e
topology: v6e:2x2x1
jax: 0.10.0
libtpu: 0.0.40
codegen_flags: <defaults>
</compile_context>

<pallas_src>
import math

import jax
import jax.numpy as jnp
from jax import lax
from jax.experimental import pallas as pl
from jax.experimental.pallas import tpu as pltpu


def _round_up(a: int, b: int) -> int:
    return (a + b - 1) // b * b


def _gelu_exact(x):
    # Matches torch.nn.functional.gelu default (erf-based); computed in f32.
    return 0.5 * x * (1.0 + lax.erf(x * (1.0 / math.sqrt(2.0))))


def ff_kernel(x_ref, w1a_ref, w1g_ref, b1a_ref, b1g_ref, w2_ref, b2_ref, o_ref):
    """One row-tile of the fused FeedForward.

    x_ref:   (tm, D)  bf16 activation tile
    w1a_ref: (D, H)   bf16  first half of W1  ('a' branch)
    w1g_ref: (D, H)   bf16  second half of W1 (gate branch)
    b1a_ref: (1, H)   f32
    b1g_ref: (1, H)   f32
    w2_ref:  (H, D)   bf16
    b2_ref:  (1, D)   f32
    o_ref:   (tm, D)  output dtype
    """
    x = x_ref[...]
    # MXU matmuls in bf16, f32 accumulation. Elementwise stays in f32.
    a = jnp.dot(x, w1a_ref[...], preferred_element_type=jnp.float32) + b1a_ref[...]
    g = jnp.dot(x, w1g_ref[...], preferred_element_type=jnp.float32) + b1g_ref[...]
    u = a * _gelu_exact(g)
    u = u.astype(w2_ref.dtype)  # back to bf16 for the second MXU pass
    out = jnp.dot(u, w2_ref[...], preferred_element_type=jnp.float32) + b2_ref[...]
    o_ref[...] = out.astype(o_ref.dtype)


def feedforward_pallas(x, w1, b1, w2, b2, *, tm=256, compute_dtype=jnp.bfloat16):
    """x: (B, N, D). w1: (D, 2*H), b1: (2*H,), w2: (H, D), b2: (D,)."""
    B, N, D = x.shape
    H2 = w1.shape[1]
    H = w2.shape[0]
    assert H2 == 2 * H

    M = B * N
    # Large row tiles keep the MXU busy; clamp for tiny inputs, keep the
    # sublane dim a multiple of 16 (bf16 packing).
    tm_eff = min(tm, _round_up(M, 16))
    M_pad = _round_up(M, tm_eff)

    x2d = x.reshape(M, D).astype(compute_dtype)
    if M_pad != M:
        x2d = jnp.pad(x2d, ((0, M_pad - M), (0, 0)))

    # Pre-split W1/b1 into [a | gates] halves (torch chunk(2, dim=-1) layout).
    w1a = w1[:, :H].astype(compute_dtype)
    w1g = w1[:, H:].astype(compute_dtype)
    w2c = w2.astype(compute_dtype)
    b1a = b1[:H].reshape(1, H).astype(jnp.float32)
    b1g = b1[H:].reshape(1, H).astype(jnp.float32)
    b2c = b2.reshape(1, D).astype(jnp.float32)

    grid = (M_pad // tm_eff,)

    # Grid-invariant operands: a single resident VMEM copy (no double-buffer).
    resident = pl.BlockSpec(memory_space=pltpu.MemorySpace.VMEM)

    w_itemsize = jnp.dtype(compute_dtype).itemsize
    flops = 2 * M_pad * D * H2 + 2 * M_pad * H * D
    bytes_accessed = (
        x2d.size * x2d.dtype.itemsize
        + (w1a.size + w1g.size + w2c.size) * w_itemsize
        + (b1a.size + b1g.size + b2c.size) * 4
        + M_pad * D * x.dtype.itemsize
    )

    out2d = pl.pallas_call(
        ff_kernel,
        out_shape=jax.ShapeDtypeStruct((M_pad, D), x.dtype),
        grid=grid,
        in_specs=[
            pl.BlockSpec((tm_eff, D), lambda i: (i, 0)),  # activation row tile
            resident,  # w1a
            resident,  # w1g
            resident,  # b1a
            resident,  # b1g
            resident,  # w2
            resident,  # b2
        ],
        out_specs=pl.BlockSpec((tm_eff, D), lambda i: (i, 0)),
        compiler_params=pltpu.CompilerParams(
            dimension_semantics=("parallel",),     # shards rows across TCs on v7x
            vmem_limit_bytes=64 * 1024 * 1024,     # safe on v5e/v6e/v7x
        ),
        cost_estimate=pl.CostEstimate(
            flops=flops,
            transcendentals=M_pad * H,             # erf in GEGLU
            bytes_accessed=bytes_accessed,
        ),
    )(x2d, w1a, w1g, b1a, b1g, w2c, b2c)

    return out2d[:M].reshape(B, N, D)


def feedforward_ref(x, w1, b1, w2, b2, *, compute_dtype=jnp.bfloat16):
    """Pure-JAX reference using the same bf16-matmul / f32-accumulate recipe."""
    H = w2.shape[0]
    xd = x.astype(compute_dtype)
    a = jnp.einsum("bnd,dh->bnh", xd, w1[:, :H].astype(compute_dtype),
                   preferred_element_type=jnp.float32) + b1[:H]
    g = jnp.einsum("bnd,dh->bnh", xd, w1[:, H:].astype(compute_dtype),
                   preferred_element_type=jnp.float32) + b1[H:]
    u = (a * _gelu_exact(g)).astype(compute_dtype)
    out = jnp.einsum("bnh,hd->bnd", u, w2.astype(compute_dtype),
                     preferred_element_type=jnp.float32) + b2
    return out.astype(x.dtype)


if __name__ == "__main__":
    # Small shapes consistent with the module: batch=2, seq=8, dim=32, mult=4
    B, N, dim, mult = 2, 8, 32, 4
    hidden = dim * mult            # 128
    key = jax.random.PRNGKey(0)
    k_x, k_w1, k_b1, k_w2, k_b2 = jax.random.split(key, 5)

    x = jax.random.normal(k_x, (B, N, dim), dtype=jnp.float32)

    # Deterministic init, roughly matching nn.Linear's uniform(-1/sqrt(in), 1/sqrt(in)).
    bound1 = 1.0 / math.sqrt(dim)
    w1 = jax.random.uniform(k_w1, (dim, hidden * 2), minval=-bound1, maxval=bound1,
                            dtype=jnp.float32)
    b1 = jax.random.uniform(k_b1, (hidden * 2,), minval=-bound1, maxval=bound1,
                            dtype=jnp.float32)
    bound2 = 1.0 / math.sqrt(hidden)
    w2 = jax.random.uniform(k_w2, (hidden, dim), minval=-bound2, maxval=bound2,
                            dtype=jnp.float32)
    b2 = jax.random.uniform(k_b2, (dim,), minval=-bound2, maxval=bound2,
                            dtype=jnp.float32)

    out = feedforward_pallas(x, w1, b1, w2, b2)
    out = jax.block_until_ready(out)
    assert out.shape == (B, N, dim)

    ref = feedforward_ref(x, w1, b1, w2, b2)
    max_err = jnp.max(jnp.abs(out - ref))
    assert jnp.allclose(out, ref, atol=2e-3, rtol=2e-3), f"mismatch vs reference, max abs err={max_err}"

    print("KERNEL_OK")
</pallas_src>

<mosaic_0001>
module attributes {stable_mosaic.version = 11 : i64} {
  func.func @ff_kernel(%arg0: i32, %arg1: memref<16x32xbf16, #tpu.memory_space<vmem>>, %arg2: memref<32x128xbf16, #tpu.memory_space<vmem>>, %arg3: memref<32x128xbf16, #tpu.memory_space<vmem>>, %arg4: memref<1x128xf32, #tpu.memory_space<vmem>>, %arg5: memref<1x128xf32, #tpu.memory_space<vmem>>, %arg6: memref<128x32xbf16, #tpu.memory_space<vmem>>, %arg7: memref<1x32xf32, #tpu.memory_space<vmem>>, %arg8: memref<16x32xf32, #tpu.memory_space<vmem>>) attributes {dimension_semantics = [#tpu.dimension_semantics<parallel>], iteration_bounds = array<i64: 1>, scalar_prefetch = 0 : i64, scratch_operands = 0 : i64, tpu.core_type = #tpu.core_type<tc>, window_params = [{transform_indices = @transform_0, window_bounds = array<i64: 16, 32>}, {pipeline_mode = #tpu.pipeline_mode<synchronous>, transform_indices = @transform_1, window_bounds = array<i64: 32, 128>}, {pipeline_mode = #tpu.pipeline_mode<synchronous>, transform_indices = @transform_2, window_bounds = array<i64: 32, 128>}, {pipeline_mode = #tpu.pipeline_mode<synchronous>, transform_indices = @transform_3, window_bounds = array<i64: 1, 128>}, {pipeline_mode = #tpu.pipeline_mode<synchronous>, transform_indices = @transform_4, window_bounds = array<i64: 1, 128>}, {pipeline_mode = #tpu.pipeline_mode<synchronous>, transform_indices = @transform_5, window_bounds = array<i64: 128, 32>}, {pipeline_mode = #tpu.pipeline_mode<synchronous>, transform_indices = @transform_6, window_bounds = array<i64: 1, 32>}, {transform_indices = @transform_7, window_bounds = array<i64: 16, 32>}]} {
    %c0 = arith.constant 0 : index
    %c0_0 = arith.constant 0 : index
    %0 = vector.load %arg1[%c0, %c0_0] : memref<16x32xbf16, #tpu.memory_space<vmem>>, vector<16x32xbf16>
    %c0_1 = arith.constant 0 : index
    %c0_2 = arith.constant 0 : index
    %1 = vector.load %arg2[%c0_1, %c0_2] : memref<32x128xbf16, #tpu.memory_space<vmem>>, vector<32x128xbf16>
    %cst = arith.constant dense<0.000000e+00> : vector<16x128xf32>
    %2 = tpu.matmul %0, %1, %cst {dimension_numbers = #tpu.dot_dimension_numbers<[1], [0], [0], [1], [0, 0, 1, 1], [], []>} : vector<16x32xbf16>, vector<32x128xbf16>, vector<16x128xf32> -> vector<16x128xf32>
    %c0_3 = arith.constant 0 : index
    %c0_4 = arith.constant 0 : index
    %3 = vector.load %arg4[%c0_3, %c0_4] : memref<1x128xf32, #tpu.memory_space<vmem>>, vector<1x128xf32>
    %4 = vector.broadcast %3 : vector<1x128xf32> to vector<16x128xf32>
    %5 = arith.addf %2, %4 : vector<16x128xf32>
    %c0_5 = arith.constant 0 : index
    %c0_6 = arith.constant 0 : index
    %6 = vector.load %arg3[%c0_5, %c0_6] : memref<32x128xbf16, #tpu.memory_space<vmem>>, vector<32x128xbf16>
    %cst_7 = arith.constant dense<0.000000e+00> : vector<16x128xf32>
    %7 = tpu.matmul %0, %6, %cst_7 {dimension_numbers = #tpu.dot_dimension_numbers<[1], [0], [0], [1], [0, 0, 1, 1], [], []>} : vector<16x32xbf16>, vector<32x128xbf16>, vector<16x128xf32> -> vector<16x128xf32>
    %c0_8 = arith.constant 0 : index
    %c0_9 = arith.constant 0 : index
    %8 = vector.load %arg5[%c0_8, %c0_9] : memref<1x128xf32, #tpu.memory_space<vmem>>, vector<1x128xf32>
    %9 = vector.broadcast %8 : vector<1x128xf32> to vector<16x128xf32>
    %10 = arith.addf %7, %9 : vector<16x128xf32>
    %cst_10 = arith.constant 5.000000e-01 : f32
    %11 = vector.broadcast %cst_10 : f32 to vector<16x128xf32>
    %12 = arith.mulf %11, %10 : vector<16x128xf32>
    %cst_11 = arith.constant 0.707106769 : f32
    %13 = vector.broadcast %cst_11 : f32 to vector<16x128xf32>
    %14 = arith.mulf %10, %13 : vector<16x128xf32>
    %15 = math.erf %14 : vector<16x128xf32>
    %cst_12 = arith.constant 1.000000e+00 : f32
    %16 = vector.broadcast %cst_12 : f32 to vector<16x128xf32>
    %17 = arith.addf %16, %15 : vector<16x128xf32>
    %18 = arith.mulf %12, %17 : vector<16x128xf32>
    %19 = arith.mulf %5, %18 : vector<16x128xf32>
    %20 = arith.truncf %19 : vector<16x128xf32> to vector<16x128xbf16>
    %c0_13 = arith.constant 0 : index
    %c0_14 = arith.constant 0 : index
    %21 = vector.load %arg6[%c0_13, %c0_14] : memref<128x32xbf16, #tpu.memory_space<vmem>>, vector<128x32xbf16>
    %cst_15 = arith.constant dense<0.000000e+00> : vector<16x32xf32>
    %22 = tpu.matmul %20, %21, %cst_15 {dimension_numbers = #tpu.dot_dimension_numbers<[1], [0], [0], [1], [0, 0, 1, 1], [], []>} : vector<16x128xbf16>, vector<128x32xbf16>, vector<16x32xf32> -> vector<16x32xf32>
    %c0_16 = arith.constant 0 : index
    %c0_17 = arith.constant 0 : index
    %23 = vector.load %arg7[%c0_16, %c0_17] : memref<1x32xf32, #tpu.memory_space<vmem>>, vector<1x32xf32>
    %24 = vector.broadcast %23 : vector<1x32xf32> to vector<16x32xf32>
    %25 = arith.addf %22, %24 : vector<16x32xf32>
    %c0_18 = arith.constant 0 : index
    %c0_19 = arith.constant 0 : index
    %26 = vector.load %arg8[%c0_18, %c0_19] : memref<16x32xf32, #tpu.memory_space<vmem>>, vector<16x32xf32>
    tpu.vector_store %arg8[%c0_18, %c0_19], %25 {strides = array<i32>} : memref<16x32xf32, #tpu.memory_space<vmem>>, vector<16x32xf32>,
    return
  }
  func.func @transform_0(%arg0: i32) -> (i32, i32) {
    %c0_i32 = arith.constant 0 : i32
    %c0_i32_0 = arith.constant 0 : i32
    return %arg0, %c0_i32 : i32, i32
  }
  func.func @transform_1(%arg0: i32) -> (i32, i32) {
    %c0_i32 = arith.constant 0 : i32
    %c0_i32_0 = arith.constant 0 : i32
    %c0_i32_1 = arith.constant 0 : i32
    return %c0_i32, %c0_i32_0 : i32, i32
  }
  func.func @transform_2(%arg0: i32) -> (i32, i32) {
    %c0_i32 = arith.constant 0 : i32
    %c0_i32_0 = arith.constant 0 : i32
    %c0_i32_1 = arith.constant 0 : i32
    return %c0_i32, %c0_i32_0 : i32, i32
  }
  func.func @transform_3(%arg0: i32) -> (i32, i32) {
    %c0_i32 = arith.constant 0 : i32
    %c0_i32_0 = arith.constant 0 : i32
    %c0_i32_1 = arith.constant 0 : i32
    return %c0_i32, %c0_i32_0 : i32, i32
  }
  func.func @transform_4(%arg0: i32) -> (i32, i32) {
    %c0_i32 = arith.constant 0 : i32
    %c0_i32_0 = arith.constant 0 : i32
    %c0_i32_1 = arith.constant 0 : i32
    return %c0_i32, %c0_i32_0 : i32, i32
  }
  func.func @transform_5(%arg0: i32) -> (i32, i32) {
    %c0_i32 = arith.constant 0 : i32
    %c0_i32_0 = arith.constant 0 : i32
    %c0_i32_1 = arith.constant 0 : i32
    return %c0_i32, %c0_i32_0 : i32, i32
  }
  func.func @transform_6(%arg0: i32) -> (i32, i32) {
    %c0_i32 = arith.constant 0 : i32
    %c0_i32_0 = arith.constant 0 : i32
    %c0_i32_1 = arith.constant 0 : i32
    return %c0_i32, %c0_i32_0 : i32, i32
  }
  func.func @transform_7(%arg0: i32) -> (i32, i32) {
    %c0_i32 = arith.constant 0 : i32
    %c0_i32_0 = arith.constant 0 : i32
    return %arg0, %c0_i32 : i32, i32
  }
}

</mosaic_0001>

<llo_original>
// kernel: tpu_custom_call.1
$region0: #{tpu_custom_call.1}
  #allocation0 [shape = 'u32[]', space=smem, size = 0x4, offset = 0x4, fixed_abs, tag = 'smem constant byte address 0x4 - core index']
  #allocation1 [shape = 'u32[144,128]{1,0:T(1,128)}', space=vmem, size = 0x12000, scoped, tag = 'internal scratch']
  %s0 = inlined_call_operand.vmem [shape: bf16[16,32], index: 0, kind: input, shape index: {}]
  %s1 = inlined_call_operand.vmem [shape: bf16[32,128], index: 1, kind: input, shape index: {}]
  %s2 = inlined_call_operand.vmem [shape: bf16[32,128], index: 2, kind: input, shape index: {}]
  %s3 = inlined_call_operand.vmem [shape: f32[1,128], index: 3, kind: input, shape index: {}]
  %s4 = inlined_call_operand.vmem [shape: f32[1,128], index: 4, kind: input, shape index: {}]
  %s5 = inlined_call_operand.vmem [shape: bf16[128,32], index: 5, kind: input, shape index: {}]
  %s6 = inlined_call_operand.vmem [shape: f32[1,32], index: 6, kind: input, shape index: {}]
  %s7 = inlined_call_operand.hbm [shape: f32[16,32], index: 7, kind: output, shape index: {}]
  %s8 = sld [smem:[#allocation0]]
  $region38: #{tpu_custom_call.1} parent=0
    _
  %s10 = ssub.s32 1, %s8
  %s11 = scalar_select 0, %s10, %s8
  $region1: #{tpu_custom_call.1} parent=0
    #allocation2 [shape = 'u8[8192]{0}', space=vmem, size = 0x2000, scoped, tag = 'output window, operand 0, single buffered']
    #allocation3 [shape = 's32[1]{0}', space=sflag, size = 0x4, scoped, tag = 'scoped memory for tpu_custom_call.1']
    %12 = vsyncpa [#allocation3], 0
    // Predicated region
    $region2: #{tpu_custom_call.1} parent=1 // pred_check
      _
    $region3: #{tpu_custom_call.1} parent=1 // pred_check_branch
      %14 = sbr.rel (0) target = $region5
    $region4: #{tpu_custom_call.1} parent=1 // pred_region
      _
    $region5: #{tpu_custom_call.1} parent=1 // pred_fallthru
      _
    // Predicated region
    $region6: #{tpu_custom_call.1} parent=1 // pred_check
      _
    $region7: #{tpu_custom_call.1} parent=1 // pred_check_branch
      %16 = sbr.rel (0) target = $region9
    $region8: #{tpu_custom_call.1} parent=1 // pred_region
      _
    $region9: #{tpu_custom_call.1} parent=1 // pred_fallthru
      _
    // Predicated region
    $region10: #{tpu_custom_call.1} parent=1 // pred_check
      _
    $region11: #{tpu_custom_call.1} parent=1 // pred_check_branch
      %18 = sbr.rel (0) target = $region13
    $region12: #{tpu_custom_call.1} parent=1 // pred_region
      _
    $region13: #{tpu_custom_call.1} parent=1 // pred_fallthru
      _
    // Predicated region
    $region14: #{tpu_custom_call.1} parent=1 // pred_check
      _
    $region15: #{tpu_custom_call.1} parent=1 // pred_check_branch
      %20 = sbr.rel (0) target = $region17
    $region16: #{tpu_custom_call.1} parent=1 // pred_region
      _
    $region17: #{tpu_custom_call.1} parent=1 // pred_fallthru
      _
    // Predicated region
    $region18: #{tpu_custom_call.1} parent=1 // pred_check
      _
    $region19: #{tpu_custom_call.1} parent=1 // pred_check_branch
      %22 = sbr.rel (0) target = $region21
    $region20: #{tpu_custom_call.1} parent=1 // pred_region
      _
    $region21: #{tpu_custom_call.1} parent=1 // pred_fallthru
      _
    // Predicated region
    $region22: #{tpu_custom_call.1} parent=1 // pred_check
      _
    $region23: #{tpu_custom_call.1} parent=1 // pred_check_branch
      %24 = sbr.rel (0) target = $region25
    $region24: #{tpu_custom_call.1} parent=1 // pred_region
      _
    $region25: #{tpu_custom_call.1} parent=1 // pred_fallthru
      _
    // Predicated region
    $region26: #{tpu_custom_call.1} parent=1 // pred_check
      _
    $region27: #{tpu_custom_call.1} parent=1 // pred_check_branch
      %26 = sbr.rel (0) target = $region29
    $region28: #{tpu_custom_call.1} parent=1 // pred_region
      _
    $region29: #{tpu_custom_call.1} parent=1 // pred_fallthru
      _
    %v28 = vld [vmem:[%s0] sm:$0xf]
    %v29 = vld [vmem:[%s0 + $0x4] sm:$0xf]
    %v30 = vld [vmem:[%s1] sm:$0xf]
    %v31 = vld [vmem:[%s1 + $0x4] sm:$0xf]
    %v32 = vld [vmem:[%s1 + $0x8] sm:$0xf]
    %v33 = vld [vmem:[%s1 + $0xc] sm:$0xf]
    %v34 = vld [vmem:[%s3] sm:$0x1]
    %v36 = vlaneseq
    %v37 = vshrl.u32 %v36, 7
    %v38 = vsub.s32 0, %v37
    %v39 = vrot.slane %v34, %v38
    %v43 = vunpack.c.l.b16 %v28
    %v44 = vunpack.c.l.b16 %v29
    %v45 = vpack.c.b16 %v44, %v43
    %v50 = vunpack.c.l.b16 %v30
    %v51 = vunpack.c.l.b16 %v31
    %v52 = vunpack.c.l.b16 %v32
    %v53 = vunpack.c.l.b16 %v33
    %v54 = vpack.c.b16 %v51, %v50
    %v55 = vpack.c.b16 %v53, %v52
    %vm58 = vcmask 261120
    %v60 = vsel %vm58, %v45, 0
    %62 = vmatprep.subr.bf16.mxu0 0
    %63 = vmatpush1.bf16.msra.mxu0 0
    %64 = vmatprep.subr.bf16.mxu0 0
    %65 = vmatpush1.bf16.msra.mxu0 0
    %66 = vmatprep.subr.bf16.mxu0 0
    %67 = vmatpush1.bf16.msra.mxu0 0
    %68 = vmatprep.subr.bf16.mxu0 0
    %69 = vmatpush1.bf16.msra.mxu0 0
    %70 = vmatprep.subr.bf16.mxu0 0
    %71 = vmatpush1.bf16.msra.mxu0 0
    %72 = vmatprep.subr.bf16.mxu0 0
    %73 = vmatpush1.bf16.msra.mxu0 0
    %74 = vmatprep.subr.bf16.mxu0 0
    %75 = vmatpush1.bf16.msra.mxu0 %v55
    %76 = vmatprep.subr.bf16.mxu0 0
    %77 = vmatpush1.bf16.msra.mxu0 %v54
    %78 = vmatprep.subr.bf16.mxu0 0
    %79 = vmatpush2.bf16.msra.mxu0 0
    %80 = vmatprep.subr.bf16.mxu0 0
    %81 = vmatpush2.bf16.msra.mxu0 0
    %82 = vmatprep.subr.bf16.mxu0 0
    %83 = vmatpush2.bf16.msra.mxu0 0
    %84 = vmatprep.subr.bf16.mxu0 0
    %85 = vmatpush2.bf16.msra.mxu0 0
    %86 = vmatprep.subr.bf16.mxu0 0
    %87 = vmatpush2.bf16.msra.mxu0 0
    %88 = vmatprep.subr.bf16.mxu0 0
    %89 = vmatpush2.bf16.msra.mxu0 0
    %90 = vmatprep.subr.bf16.mxu0 0
    %91 = vmatpush2.bf16.msra.mxu0 0
    %92 = vmatprep.subr.bf16.mxu0 0
    %93 = vmatpush2.bf16.msra.mxu0 0
    %94 = vmatprep.mubr.bf16.mxu0 0
    %95 = vmatmul.mubr.bf16.gmra.mxu0 %v60
    %v96 = vpop.f32.mrf.mxu0
    %v97 = vadd.f32 %v39, %v96
    %v98 = vpop.f32.mrf.mxu0
    %v99 = vpop.f32.mrf.mxu0
    %v100 = vadd.f32 %v39, %v99
    %v101 = vpop.f32.mrf.mxu0
    %102 = vdwg.mxu0
    %v103 = vld [vmem:[%s2] sm:$0xf]
    %v104 = vld [vmem:[%s2 + $0x4] sm:$0xf]
    %v105 = vld [vmem:[%s2 + $0x8] sm:$0xf]
    %v106 = vld [vmem:[%s2 + $0xc] sm:$0xf]
    %v107 = vld [vmem:[%s4] sm:$0x1]
    %v109 = vlaneseq
    %v110 = vshrl.u32 %v109, 7
    %v111 = vsub.s32 0, %v110
    %v112 = vrot.slane %v107, %v111
    %v118 = vunpack.c.l.b16 %v103
    %v119 = vunpack.c.l.b16 %v104
    %v120 = vunpack.c.l.b16 %v105
    %v121 = vunpack.c.l.b16 %v106
    %v122 = vpack.c.b16 %v119, %v118
    %v123 = vpack.c.b16 %v121, %v120
    %126 = vmatprep.subr.bf16.mxu0 0
    %127 = vmatpush1.bf16.msra.mxu0 0
    %128 = vmatprep.subr.bf16.mxu0 0
    %129 = vmatpush1.bf16.msra.mxu0 0
    %130 = vmatprep.subr.bf16.mxu0 0
    %131 = vmatpush1.bf16.msra.mxu0 0
    %132 = vmatprep.subr.bf16.mxu0 0
    %133 = vmatpush1.bf16.msra.mxu0 0
    %134 = vmatprep.subr.bf16.mxu0 0
    %135 = vmatpush1.bf16.msra.mxu0 0
    %136 = vmatprep.subr.bf16.mxu0 0
    %137 = vmatpush1.bf16.msra.mxu0 0
    %138 = vmatprep.subr.bf16.mxu0 0
    %139 = vmatpush1.bf16.msra.mxu0 %v123
    %140 = vmatprep.subr.bf16.mxu0 0
    %141 = vmatpush1.bf16.msra.mxu0 %v122
    %142 = vmatprep.subr.bf16.mxu0 0
    %143 = vmatpush2.bf16.msra.mxu0 0
    %144 = vmatprep.subr.bf16.mxu0 0
    %145 = vmatpush2.bf16.msra.mxu0 0
    %146 = vmatprep.subr.bf16.mxu0 0
    %147 = vmatpush2.bf16.msra.mxu0 0
    %148 = vmatprep.subr.bf16.mxu0 0
    %149 = vmatpush2.bf16.msra.mxu0 0
    %150 = vmatprep.subr.bf16.mxu0 0
    %151 = vmatpush2.bf16.msra.mxu0 0
    %152 = vmatprep.subr.bf16.mxu0 0
    %153 = vmatpush2.bf16.msra.mxu0 0
    %154 = vmatprep.subr.bf16.mxu0 0
    %155 = vmatpush2.bf16.msra.mxu0 0
    %156 = vmatprep.subr.bf16.mxu0 0
    %157 = vmatpush2.bf16.msra.mxu0 0
    %158 = vmatprep.mubr.bf16.mxu0 0
    %159 = vmatmul.mubr.bf16.gmra.mxu0 %v60
    %v160 = vpop.f32.mrf.mxu0
    %v161 = vadd.f32 %v112, %v160
    %v162 = vpop.f32.mrf.mxu0
    %v163 = vpop.f32.mrf.mxu0
    %v164 = vadd.f32 %v112, %v163
    %v165 = vpop.f32.mrf.mxu0
    %166 = vdwg.mxu0
    %v167 = vmul.f32 %v161, 0.5
    %v168 = vmul.f32 %v164, 0.5
    %v169 = vmul.f32 %v161, 0.70710677
    %v170 = vmul.f32 %v164, 0.70710677
    %v171 = verf.f32.pop %v169
    %v172 = verf.f32.pop %v170
    %v173 = vadd.f32 %v171, 1.0
    %v174 = vadd.f32 %v172, 1.0
    %v175 = vmul.f32 %v167, %v173
    %v176 = vmul.f32 %v168, %v174
    %v177 = vmul.f32 %v97, %v175
    %v178 = vmul.f32 %v100, %v176
    %v179 = vpack.c.bf16 %v178, %v177
    %v180 = vld [vmem:[%s5] sm:$0xf]
    %v181 = vld [vmem:[%s5 + $0x4] sm:$0xf]
    %v182 = vld [vmem:[%s5 + $0x8] sm:$0xf]
    %v183 = vld [vmem:[%s5 + $0xc] sm:$0xf]
    %v184 = vld [vmem:[%s5 + $0x10] sm:$0xf]
    %v185 = vld [vmem:[%s5 + $0x14] sm:$0xf]
    %v186 = vld [vmem:[%s5 + $0x18] sm:$0xf]
    %v187 = vld [vmem:[%s5 + $0x1c] sm:$0xf]
    %v188 = vld [vmem:[%s5 + $0x20] sm:$0xf]
    %v189 = vld [vmem:[%s5 + $0x24] sm:$0xf]
    %v190 = vld [vmem:[%s5 + $0x28] sm:$0xf]
    %v191 = vld [vmem:[%s5 + $0x2c] sm:$0xf]
    %v192 = vld [vmem:[%s5 + $0x30] sm:$0xf]
    %v193 = vld [vmem:[%s5 + $0x34] sm:$0xf]
    %v194 = vld [vmem:[%s5 + $0x38] sm:$0xf]
    %v195 = vld [vmem:[%s5 + $0x3c] sm:$0xf]
    %v196 = vld [vmem:[%s6] sm:$0x1]
    %v198 = vlaneseq
    %v199 = vshrl.u32 %v198, 7
    %v200 = vsub.s32 0, %v199
    %v201 = vrot.slane %v196, %v200
    %v219 = vunpack.c.l.b16 %v180
    %v220 = vunpack.c.l.b16 %v181
    %v221 = vunpack.c.l.b16 %v182
    %v222 = vunpack.c.l.b16 %v183
    %v223 = vunpack.c.l.b16 %v184
    %v224 = vunpack.c.l.b16 %v185
    %v225 = vunpack.c.l.b16 %v186
    %v226 = vunpack.c.l.b16 %v187
    %v227 = vunpack.c.l.b16 %v188
    %v228 = vunpack.c.l.b16 %v189
    %v229 = vunpack.c.l.b16 %v190
    %v230 = vunpack.c.l.b16 %v191
    %v231 = vunpack.c.l.b16 %v192
    %v232 = vunpack.c.l.b16 %v193
    %v233 = vunpack.c.l.b16 %v194
    %v234 = vunpack.c.l.b16 %v195
    %v235 = vpack.c.b16 %v220, %v219
    %v236 = vpack.c.b16 %v222, %v221
    %v237 = vpack.c.b16 %v224, %v223
    %v238 = vpack.c.b16 %v226, %v225
    %v239 = vpack.c.b16 %v228, %v227
    %v240 = vpack.c.b16 %v230, %v229
    %v241 = vpack.c.b16 %v232, %v231
    %v242 = vpack.c.b16 %v234, %v233
    %251 = vmatprep.subr.bf16.mxu0 0
    %252 = vmatpush1.bf16.msra.mxu0 %v242
    %253 = vmatprep.subr.bf16.mxu0 0
    %254 = vmatpush1.bf16.msra.mxu0 %v241
    %255 = vmatprep.subr.bf16.mxu0 0
    %256 = vmatpush1.bf16.msra.mxu0 %v240
    %257 = vmatprep.subr.bf16.mxu0 0
    %258 = vmatpush1.bf16.msra.mxu0 %v239
    %259 = vmatprep.subr.bf16.mxu0 0
    %260 = vmatpush1.bf16.msra.mxu0 %v238
    %261 = vmatprep.subr.bf16.mxu0 0
    %262 = vmatpush1.bf16.msra.mxu0 %v237
    %263 = vmatprep.subr.bf16.mxu0 0
    %264 = vmatpush1.bf16.msra.mxu0 %v236
    %265 = vmatprep.subr.bf16.mxu0 0
    %266 = vmatpush1.bf16.msra.mxu0 %v235
    %267 = vmatprep.subr.bf16.mxu0 0
    %268 = vmatpush2.bf16.msra.mxu0 0
    %269 = vmatprep.subr.bf16.mxu0 0
    %270 = vmatpush2.bf16.msra.mxu0 0
    %271 = vmatprep.subr.bf16.mxu0 0
    %272 = vmatpush2.bf16.msra.mxu0 0
    %273 = vmatprep.subr.bf16.mxu0 0
    %274 = vmatpush2.bf16.msra.mxu0 0
    %275 = vmatprep.subr.bf16.mxu0 0
    %276 = vmatpush2.bf16.msra.mxu0 0
    %277 = vmatprep.subr.bf16.mxu0 0
    %278 = vmatpush2.bf16.msra.mxu0 0
    %279 = vmatprep.subr.bf16.mxu0 0
    %280 = vmatpush2.bf16.msra.mxu0 0
    %281 = vmatprep.subr.bf16.mxu0 0
    %282 = vmatpush2.bf16.msra.mxu0 0
    %283 = vmatprep.mubr.bf16.mxu0 0
    %284 = vmatmul.mubr.bf16.gmra.mxu0 %v179
    %v285 = vpop.f32.mrf.mxu0
    %v286 = vadd.f32 %v201, %v285
    %v287 = vpop.f32.mrf.mxu0
    %v288 = vpop.f32.mrf.mxu0
    %v289 = vadd.f32 %v201, %v288
    %v290 = vpop.f32.mrf.mxu0
    %291 = vdwg.mxu0
    %292 = vst.msk [vmem:[#allocation2] sm:$0xff] %vm58, %v286
    %293 = vst.msk [vmem:[#allocation2 + $0x8] sm:$0xff] %vm58, %v289
    // Predicated region
    $region30: #{tpu_custom_call.1} parent=1 // pred_check
      _
    $region31: #{tpu_custom_call.1} parent=1 // pred_check_branch
      %295 = sbr.rel (0) target = $region33
    $region32: #{tpu_custom_call.1} parent=1 // pred_region
      %s297 = ssub.s32 256, 256
      %298 = vsyncadd [#allocation3], %s297
      %s299 = sshll.u32 [#allocation2], 4
      %s300 = int_to_ptr.vmem [resolvable:$true] %s299
      %305 = dma.vmem_to_hbm [thread:$0]  %s300, 256, %s7, [#allocation3], 128, 128, 8
    $region33: #{tpu_custom_call.1} parent=1 // pred_fallthru
      _
    // Predicated region
    $region34: #{tpu_custom_call.1} parent=1 // pred_check
      _
    $region35: #{tpu_custom_call.1} parent=1 // pred_check_branch
      %307 = sbr.rel (0) target = $region37
    $region36: #{tpu_custom_call.1} parent=1 // pred_region
      %308 = dma.done [#allocation3], 256
    $region37: #{tpu_custom_call.1} parent=1 // pred_fallthru
      _
    %309 = vsyncpa [#allocation3], 1

</llo_original>
